<compile_context>
chip_gen: v7x
topology: tpu7x:2x2x1
jax: 0.10.0
libtpu: 0.0.40
codegen_flags: <defaults>
</compile_context>

<pallas_src>
import math

import numpy as np
import jax
import jax.numpy as jnp
from jax.experimental import pallas as pl
from jax.experimental.pallas import tpu as pltpu


# ----------------------------------------------------------------------------
# Kernel bodies
# ----------------------------------------------------------------------------
def _softplus(x):
    # numerically stable softplus: max/abs on the VPU, exp/log1p on the EUP slot
    return jnp.maximum(x, 0.0) + jnp.log1p(jnp.exp(-jnp.abs(x)))


def _mlp_body(x, w1_ref, b1_ref, w2_ref, b2_ref, w3_ref, b3_ref):
    h1 = jnp.maximum(
        jnp.dot(x, w1_ref[...], preferred_element_type=jnp.float32) + b1_ref[...], 0.0)
    h2 = jnp.maximum(
        jnp.dot(h1, w2_ref[...], preferred_element_type=jnp.float32) + b2_ref[...], 0.0)
    return jnp.dot(h2, w3_ref[...], preferred_element_type=jnp.float32) + b3_ref[...]


def _mlp_kernel(x_ref, w1_ref, b1_ref, w2_ref, b2_ref, w3_ref, b3_ref, preds_ref):
    preds_ref[...] = _mlp_body(x_ref[...], w1_ref, b1_ref, w2_ref, b2_ref, w3_ref, b3_ref)


def _fused_kernel(x_ref, w1_ref, b1_ref, w2_ref, b2_ref, w3_ref, b3_ref, kint_ref,
                  preds_ref, surv_ref):
    # net(x) on the flattened (tile_b*T, D) row block
    p = _mlp_body(x_ref[...], w1_ref, b1_ref, w2_ref, b2_ref, w3_ref, b3_ref)
    preds_ref[...] = p
    # softplus hazard + (trapezoid * dt -> pad -> cumsum) folded into one matmul
    hz = _softplus(p)                                               # (rows, R)
    csum = jnp.dot(kint_ref[...], hz, preferred_element_type=jnp.float32)
    surv_ref[...] = jnp.exp(-csum)


def _surv_kernel(p_ref, kint_ref, surv_ref):
    hz = _softplus(p_ref[...])
    csum = jnp.dot(kint_ref[...], hz, preferred_element_type=jnp.float32)
    surv_ref[...] = jnp.exp(-csum)


# ----------------------------------------------------------------------------
# Tiling / padding / integration-matrix helpers (wrapper side, plain XLA)
# ----------------------------------------------------------------------------
def _choose_tile_b(n_batch, n_time, target_rows=512):
    """Batch-tile size tb so that tb*n_time rows per grid step:
       - is a multiple of 8 (sublane alignment for the row block),
       - is large enough (~target_rows) to amortise per-step overhead,
       - still leaves >=2 grid steps when the batch allows it (v7x megacore)."""
    g = 8 // math.gcd(n_time, 8)                  # smallest tb with tb*T % 8 == 0
    tb = max(g, (target_rows // max(n_time, 1)) // g * g)
    b_ceil = -(-n_batch // g) * g
    tb = min(tb, b_ceil)
    if n_batch > g and tb >= n_batch:             # keep >= 2 parallel steps
        half = -(-n_batch // 2)
        tb = max(g, -(-half // g) * g)
    return tb


def _pad_batch(x, tile_b):
    """Pad the leading (batch) axis with whole dummy samples to a multiple of tile_b."""
    b = x.shape[0]
    b_pad = -(-b // tile_b) * tile_b
    if b_pad != b:
        pad = [(0, b_pad - b)] + [(0, 0)] * (x.ndim - 1)
        x = jnp.pad(x, pad)
    return x, b_pad


def _integration_matrix(input_times):
    """Wint[k, t] with csum[n, t] = sum_k hazard[n, k] * Wint[k, t] reproducing:
       conv1d([0.5, 0.5]) -> * diff(times) -> pad_col(start) -> cumsum."""
    t = input_times.astype(jnp.float32)
    T = t.shape[0]
    avg = 0.5 * (jnp.eye(T, dtype=jnp.float32) + jnp.eye(T, k=1, dtype=jnp.float32))
    dt_shift = jnp.concatenate([jnp.zeros((1,), jnp.float32), jnp.diff(t)])
    upper = jnp.triu(jnp.ones((T, T), dtype=jnp.float32))
    return (avg * dt_shift[None, :]) @ upper                        # (T, T)


def _block_diag_integration(input_times, tile_b):
    """Kint = kron(I_tile_b, Wint.T): block-diagonal so each sample in the tile
    integrates only over its own T rows.  csum_flat = Kint @ hazard_flat."""
    wint = _integration_matrix(input_times)
    return jnp.kron(jnp.eye(tile_b, dtype=jnp.float32), wint.T)     # (tb*T, tb*T)


_FULL = lambda i: (0, 0)   # resident blocks: weights, biases, Kint


# ----------------------------------------------------------------------------
# Pallas wrappers
# ----------------------------------------------------------------------------
def mlp_forward(x, params, *, target_rows=512):
    """x: (B, T, D) float32 -> preds (B, T, R)  (== self.net(x))."""
    w1, b1, w2, b2, w3, b3 = params
    B, T, D = x.shape
    H = w1.shape[1]
    R = w3.shape[1]
    tb = _choose_tile_b(B, T, target_rows)
    xp, b_pad = _pad_batch(x, tb)
    rows = tb * T
    m_pad = b_pad * T
    out = pl.pallas_call(
        _mlp_kernel,
        out_shape=jax.ShapeDtypeStruct((m_pad, R), jnp.float32),
        grid=(m_pad // rows,),
        in_specs=[
            pl.BlockSpec((rows, D), lambda i: (i, 0)),
            pl.BlockSpec((D, H), _FULL), pl.BlockSpec((1, H), _FULL),
            pl.BlockSpec((H, H), _FULL), pl.BlockSpec((1, H), _FULL),
            pl.BlockSpec((H, R), _FULL), pl.BlockSpec((1, R), _FULL),
        ],
        out_specs=pl.BlockSpec((rows, R), lambda i: (i, 0)),
        compiler_params=pltpu.CompilerParams(dimension_semantics=("parallel",)),
    )(xp.reshape(m_pad, D), w1, b1, w2, b2, w3, b3)
    return out[: B * T].reshape(B, T, R)


def forward_and_surv(x, params, input_times, *, target_rows=512):
    """Fused net(x) + softplus hazard + trapezoid hazard->survival in one kernel.
    x: (B, T, D), input_times: (T,) -> (preds (B, T, R), surv (B, T, R))."""
    w1, b1, w2, b2, w3, b3 = params
    B, T, D = x.shape
    H = w1.shape[1]
    R = w3.shape[1]
    tb = _choose_tile_b(B, T, target_rows)
    xp, b_pad = _pad_batch(x, tb)
    rows = tb * T
    m_pad = b_pad * T
    kint = _block_diag_integration(input_times, tb)                 # (rows, rows)
    preds, surv = pl.pallas_call(
        _fused_kernel,
        out_shape=(jax.ShapeDtypeStruct((m_pad, R), jnp.float32),
                   jax.ShapeDtypeStruct((m_pad, R), jnp.float32)),
        grid=(m_pad // rows,),
        in_specs=[
            pl.BlockSpec((rows, D), lambda i: (i, 0)),
            pl.BlockSpec((D, H), _FULL), pl.BlockSpec((1, H), _FULL),
            pl.BlockSpec((H, H), _FULL), pl.BlockSpec((1, H), _FULL),
            pl.BlockSpec((H, R), _FULL), pl.BlockSpec((1, R), _FULL),
            pl.BlockSpec((rows, rows), _FULL),
        ],
        out_specs=(pl.BlockSpec((rows, R), lambda i: (i, 0)),
                   pl.BlockSpec((rows, R), lambda i: (i, 0))),
        compiler_params=pltpu.CompilerParams(dimension_semantics=("parallel",)),
    )(xp.reshape(m_pad, D), w1, b1, w2, b2, w3, b3, kint)
    preds = preds[: B * T].reshape(B, T, R)
    surv = surv[: B * T].reshape(B, T, R)
    return preds, surv


def pred_to_surv(preds, input_times, *, target_rows=512):
    """preds: (N, T, R) -> surv (N, T, R)  (softplus hazard, method='trapezoid')."""
    N, T, R = preds.shape
    tb = _choose_tile_b(N, T, target_rows)
    pp, n_pad = _pad_batch(preds, tb)
    rows = tb * T
    m_pad = n_pad * T
    kint = _block_diag_integration(input_times, tb)
    surv = pl.pallas_call(
        _surv_kernel,
        out_shape=jax.ShapeDtypeStruct((m_pad, R), jnp.float32),
        grid=(m_pad // rows,),
        in_specs=[
            pl.BlockSpec((rows, R), lambda i: (i, 0)),
            pl.BlockSpec((rows, rows), _FULL),
        ],
        out_specs=pl.BlockSpec((rows, R), lambda i: (i, 0)),
        compiler_params=pltpu.CompilerParams(dimension_semantics=("parallel",)),
    )(pp.reshape(m_pad, R), kint)
    return surv[: N * T].reshape(N, T, R)


# ----------------------------------------------------------------------------
# ICTSurFMulti (JAX/Pallas version of the inference path)
# ----------------------------------------------------------------------------
class ICTSurFMultiPallas:
    # TODO(synk): fit()/evaluate()/get_loader() are host-side training
    # orchestration (DataLoader, torch.save, pandas metrics) with no Pallas
    # equivalent; only the forward / hazard->survival math is ported.

    def __init__(self, params):
        self.params = params
        self.pred_method = "trapezoid"

    def forward(self, x):
        # == self.net(x) in the PyTorch module
        return mlp_forward(x, self.params)

    def pred_to_surv(self, preds, input_times):
        return pred_to_surv(preds, input_times)

    def forward_to_surv(self, x, input_times):
        # fused fast path: preds and surv from a single pallas_call
        return forward_and_surv(x, self.params, input_times)


def init_params(key, d_in, hidden, n_risks):
    ks = jax.random.split(key, 6)
    s1 = 1.0 / np.sqrt(d_in)
    s2 = 1.0 / np.sqrt(hidden)
    w1 = jax.random.uniform(ks[0], (d_in, hidden), jnp.float32, -s1, s1)
    b1 = jax.random.uniform(ks[1], (1, hidden), jnp.float32, -s1, s1)
    w2 = jax.random.uniform(ks[2], (hidden, hidden), jnp.float32, -s2, s2)
    b2 = jax.random.uniform(ks[3], (1, hidden), jnp.float32, -s2, s2)
    w3 = jax.random.uniform(ks[4], (hidden, n_risks), jnp.float32, -s2, s2)
    b3 = jax.random.uniform(ks[5], (1, n_risks), jnp.float32, -s2, s2)
    return w1, b1, w2, b2, w3, b3


def _reference(x, params, input_times):
    """Pure-JAX reference of net forward + trapezoid hazard->surv pipeline."""
    w1, b1, w2, b2, w3, b3 = params
    B, T, D = x.shape
    h1 = jnp.maximum(x.reshape(B * T, D) @ w1 + b1, 0.0)
    h2 = jnp.maximum(h1 @ w2 + b2, 0.0)
    preds = (h2 @ w3 + b3).reshape(B, T, -1)
    hz = jax.nn.softplus(preds)                                      # (B, T, R)
    dt = jnp.diff(input_times)                                       # (T-1,)
    trap = 0.5 * (hz[:, :-1, :] + hz[:, 1:, :]) * dt[None, :, None]  # (B, T-1, R)
    padded = jnp.concatenate([jnp.zeros((B, 1, trap.shape[-1])), trap], axis=1)
    surv = jnp.exp(-jnp.cumsum(padded, axis=1))
    return preds, surv


if __name__ == "__main__":
    key = jax.random.PRNGKey(0)
    B, T, D, H, R = 8, 10, 6, 32, 2   # batch, n_discrete_time, features(+time), hidden, n_risks

    kx, kp = jax.random.split(key)
    x = jax.random.normal(kx, (B, T, D), dtype=jnp.float32)
    input_times = jnp.linspace(0.0, 5.0, T, dtype=jnp.float32)
    params = init_params(kp, D, H, R)

    model = ICTSurFMultiPallas(params)

    # fused path (one pallas_call for preds + surv)
    preds, surv = model.forward_to_surv(x, input_times)
    # module-API parity path: forward() then pred_to_surv()
    preds2 = model.forward(x)
    surv2 = model.pred_to_surv(preds2, input_times)
    preds, surv, preds2, surv2 = jax.block_until_ready((preds, surv, preds2, surv2))

    # sanity check against pure-JAX reference
    preds_ref, surv_ref = _reference(x, params, input_times)
    np.testing.assert_allclose(np.asarray(preds), np.asarray(preds_ref), rtol=1e-4, atol=1e-4)
    np.testing.assert_allclose(np.asarray(surv), np.asarray(surv_ref), rtol=1e-4, atol=1e-4)
    np.testing.assert_allclose(np.asarray(preds2), np.asarray(preds_ref), rtol=1e-4, atol=1e-4)
    np.testing.assert_allclose(np.asarray(surv2), np.asarray(surv_ref), rtol=1e-4, atol=1e-4)

    print("KERNEL_OK")
</pallas_src>

<mosaic_0001>
module attributes {stable_mosaic.version = 11 : i64} {
  func.func @_fused_kernel(%arg0: i32, %arg1: memref<40x6xf32, #tpu.memory_space<vmem>>, %arg2: memref<6x32xf32, #tpu.memory_space<vmem>>, %arg3: memref<1x32xf32, #tpu.memory_space<vmem>>, %arg4: memref<32x32xf32, #tpu.memory_space<vmem>>, %arg5: memref<1x32xf32, #tpu.memory_space<vmem>>, %arg6: memref<32x2xf32, #tpu.memory_space<vmem>>, %arg7: memref<1x2xf32, #tpu.memory_space<vmem>>, %arg8: memref<40x40xf32, #tpu.memory_space<vmem>>, %arg9: memref<40x2xf32, #tpu.memory_space<vmem>>, %arg10: memref<40x2xf32, #tpu.memory_space<vmem>>) attributes {dimension_semantics = [#tpu.dimension_semantics<parallel>], iteration_bounds = array<i64: 2>, scalar_prefetch = 0 : i64, scratch_operands = 0 : i64, tpu.core_type = #tpu.core_type<tc>, window_params = [{transform_indices = @transform_0, window_bounds = array<i64: 40, 6>}, {pipeline_mode = #tpu.pipeline_mode<synchronous>, transform_indices = @transform_1, window_bounds = array<i64: 6, 32>}, {pipeline_mode = #tpu.pipeline_mode<synchronous>, transform_indices = @transform_2, window_bounds = array<i64: 1, 32>}, {pipeline_mode = #tpu.pipeline_mode<synchronous>, transform_indices = @transform_3, window_bounds = array<i64: 32, 32>}, {pipeline_mode = #tpu.pipeline_mode<synchronous>, transform_indices = @transform_4, window_bounds = array<i64: 1, 32>}, {pipeline_mode = #tpu.pipeline_mode<synchronous>, transform_indices = @transform_5, window_bounds = array<i64: 32, 2>}, {pipeline_mode = #tpu.pipeline_mode<synchronous>, transform_indices = @transform_6, window_bounds = array<i64: 1, 2>}, {pipeline_mode = #tpu.pipeline_mode<synchronous>, transform_indices = @transform_7, window_bounds = array<i64: 40, 40>}, {transform_indices = @transform_8, window_bounds = array<i64: 40, 2>}, {transform_indices = @transform_9, window_bounds = array<i64: 40, 2>}]} {
    %c0 = arith.constant 0 : index
    %c0_0 = arith.constant 0 : index
    %0 = vector.load %arg1[%c0, %c0_0] : memref<40x6xf32, #tpu.memory_space<vmem>>, vector<40x6xf32>
    %c0_1 = arith.constant 0 : index
    %c0_2 = arith.constant 0 : index
    %1 = vector.load %arg2[%c0_1, %c0_2] : memref<6x32xf32, #tpu.memory_space<vmem>>, vector<6x32xf32>
    %cst = arith.constant dense<0.000000e+00> : vector<40x32xf32>
    %2 = tpu.matmul %0, %1, %cst {dimension_numbers = #tpu.dot_dimension_numbers<[1], [0], [0], [1], [0, 0, 1, 1], [], []>} : vector<40x6xf32>, vector<6x32xf32>, vector<40x32xf32> -> vector<40x32xf32>
    %c0_3 = arith.constant 0 : index
    %c0_4 = arith.constant 0 : index
    %3 = vector.load %arg3[%c0_3, %c0_4] : memref<1x32xf32, #tpu.memory_space<vmem>>, vector<1x32xf32>
    %4 = vector.broadcast %3 : vector<1x32xf32> to vector<40x32xf32>
    %5 = arith.addf %2, %4 : vector<40x32xf32>
    %cst_5 = arith.constant 0.000000e+00 : f32
    %6 = vector.broadcast %cst_5 : f32 to vector<40x32xf32>
    %7 = arith.maximumf %5, %6 : vector<40x32xf32>
    %c0_6 = arith.constant 0 : index
    %c0_7 = arith.constant 0 : index
    %8 = vector.load %arg4[%c0_6, %c0_7] : memref<32x32xf32, #tpu.memory_space<vmem>>, vector<32x32xf32>
    %cst_8 = arith.constant dense<0.000000e+00> : vector<40x32xf32>
    %9 = tpu.matmul %7, %8, %cst_8 {dimension_numbers = #tpu.dot_dimension_numbers<[1], [0], [0], [1], [0, 0, 1, 1], [], []>} : vector<40x32xf32>, vector<32x32xf32>, vector<40x32xf32> -> vector<40x32xf32>
    %c0_9 = arith.constant 0 : index
    %c0_10 = arith.constant 0 : index
    %10 = vector.load %arg5[%c0_9, %c0_10] : memref<1x32xf32, #tpu.memory_space<vmem>>, vector<1x32xf32>
    %11 = vector.broadcast %10 : vector<1x32xf32> to vector<40x32xf32>
    %12 = arith.addf %9, %11 : vector<40x32xf32>
    %cst_11 = arith.constant 0.000000e+00 : f32
    %13 = vector.broadcast %cst_11 : f32 to vector<40x32xf32>
    %14 = arith.maximumf %12, %13 : vector<40x32xf32>
    %c0_12 = arith.constant 0 : index
    %c0_13 = arith.constant 0 : index
    %15 = vector.load %arg6[%c0_12, %c0_13] : memref<32x2xf32, #tpu.memory_space<vmem>>, vector<32x2xf32>
    %cst_14 = arith.constant dense<0.000000e+00> : vector<40x2xf32>
    %16 = tpu.matmul %14, %15, %cst_14 {dimension_numbers = #tpu.dot_dimension_numbers<[1], [0], [0], [1], [0, 0, 1, 1], [], []>} : vector<40x32xf32>, vector<32x2xf32>, vector<40x2xf32> -> vector<40x2xf32>
    %c0_15 = arith.constant 0 : index
    %c0_16 = arith.constant 0 : index
    %17 = vector.load %arg7[%c0_15, %c0_16] : memref<1x2xf32, #tpu.memory_space<vmem>>, vector<1x2xf32>
    %18 = vector.broadcast %17 : vector<1x2xf32> to vector<40x2xf32>
    %19 = arith.addf %16, %18 : vector<40x2xf32>
    %c0_17 = arith.constant 0 : index
    %c0_18 = arith.constant 0 : index
    %20 = vector.load %arg9[%c0_17, %c0_18] : memref<40x2xf32, #tpu.memory_space<vmem>>, vector<40x2xf32>
    tpu.vector_store %arg9[%c0_17, %c0_18], %19 {strides = array<i32>} : memref<40x2xf32, #tpu.memory_space<vmem>>, vector<40x2xf32>,
    %cst_19 = arith.constant 0.000000e+00 : f32
    %21 = vector.broadcast %cst_19 : f32 to vector<40x2xf32>
    %22 = arith.maximumf %19, %21 : vector<40x2xf32>
    %23 = math.absf %19 : vector<40x2xf32>
    %cst_20 = arith.constant 0.000000e+00 : f32
    %24 = vector.broadcast %cst_20 : f32 to vector<40x2xf32>
    %25 = arith.subf %24, %23 : vector<40x2xf32>
    %26 = math.exp %25 : vector<40x2xf32>
    %27 = math.log1p %26 : vector<40x2xf32>
    %28 = arith.addf %22, %27 : vector<40x2xf32>
    %c0_21 = arith.constant 0 : index
    %c0_22 = arith.constant 0 : index
    %29 = vector.load %arg8[%c0_21, %c0_22] : memref<40x40xf32, #tpu.memory_space<vmem>>, vector<40x40xf32>
    %cst_23 = arith.constant dense<0.000000e+00> : vector<40x2xf32>
    %30 = tpu.matmul %29, %28, %cst_23 {dimension_numbers = #tpu.dot_dimension_numbers<[1], [0], [0], [1], [0, 0, 1, 1], [], []>} : vector<40x40xf32>, vector<40x2xf32>, vector<40x2xf32> -> vector<40x2xf32>
    %cst_24 = arith.constant 0.000000e+00 : f32
    %31 = vector.broadcast %cst_24 : f32 to vector<40x2xf32>
    %32 = arith.subf %31, %30 : vector<40x2xf32>
    %33 = math.exp %32 : vector<40x2xf32>
    %c0_25 = arith.constant 0 : index
    %c0_26 = arith.constant 0 : index
    %34 = vector.load %arg10[%c0_25, %c0_26] : memref<40x2xf32, #tpu.memory_space<vmem>>, vector<40x2xf32>
    tpu.vector_store %arg10[%c0_25, %c0_26], %33 {strides = array<i32>} : memref<40x2xf32, #tpu.memory_space<vmem>>, vector<40x2xf32>,
    return
  }
  func.func @transform_0(%arg0: i32) -> (i32, i32) {
    %c0_i32 = arith.constant 0 : i32
    %c0_i32_0 = arith.constant 0 : i32
    return %arg0, %c0_i32 : i32, i32
  }
  func.func @transform_1(%arg0: i32) -> (i32, i32) {
    %c0_i32 = arith.constant 0 : i32
    %c0_i32_0 = arith.constant 0 : i32
    %c0_i32_1 = arith.constant 0 : i32
    return %c0_i32, %c0_i32_0 : i32, i32
  }
  func.func @transform_2(%arg0: i32) -> (i32, i32) {
    %c0_i32 = arith.constant 0 : i32
    %c0_i32_0 = arith.constant 0 : i32
    %c0_i32_1 = arith.constant 0 : i32
    return %c0_i32, %c0_i32_0 : i32, i32
  }
  func.func @transform_3(%arg0: i32) -> (i32, i32) {
    %c0_i32 = arith.constant 0 : i32
    %c0_i32_0 = arith.constant 0 : i32
    %c0_i32_1 = arith.constant 0 : i32
    return %c0_i32, %c0_i32_0 : i32, i32
  }
  func.func @transform_4(%arg0: i32) -> (i32, i32) {
    %c0_i32 = arith.constant 0 : i32
    %c0_i32_0 = arith.constant 0 : i32
    %c0_i32_1 = arith.constant 0 : i32
    return %c0_i32, %c0_i32_0 : i32, i32
  }
  func.func @transform_5(%arg0: i32) -> (i32, i32) {
    %c0_i32 = arith.constant 0 : i32
    %c0_i32_0 = arith.constant 0 : i32
    %c0_i32_1 = arith.constant 0 : i32
    return %c0_i32, %c0_i32_0 : i32, i32
  }
  func.func @transform_6(%arg0: i32) -> (i32, i32) {
    %c0_i32 = arith.constant 0 : i32
    %c0_i32_0 = arith.constant 0 : i32
    %c0_i32_1 = arith.constant 0 : i32
    return %c0_i32, %c0_i32_0 : i32, i32
  }
  func.func @transform_7(%arg0: i32) -> (i32, i32) {
    %c0_i32 = arith.constant 0 : i32
    %c0_i32_0 = arith.constant 0 : i32
    %c0_i32_1 = arith.constant 0 : i32
    return %c0_i32, %c0_i32_0 : i32, i32
  }
  func.func @transform_8(%arg0: i32) -> (i32, i32) {
    %c0_i32 = arith.constant 0 : i32
    %c0_i32_0 = arith.constant 0 : i32
    return %arg0, %c0_i32 : i32, i32
  }
  func.func @transform_9(%arg0: i32) -> (i32, i32) {
    %c0_i32 = arith.constant 0 : i32
    %c0_i32_0 = arith.constant 0 : i32
    return %arg0, %c0_i32 : i32, i32
  }
}

</mosaic_0001>

<llo_original>
// kernel: tpu_custom_call.1
$region0: #{tpu_custom_call.1}
  #allocation0 [shape = 'u32[]', space=smem, size = 0x4, offset = 0x4, fixed_abs, tag = 'smem constant byte address 0x4 - core index']
  #allocation1 [shape = 'u32[144,128]{1,0:T(1,128)}', space=vmem, size = 0x12000, scoped, tag = 'internal scratch']
  %s0 = inlined_call_operand.vmem [shape: f32[80,6], index: 0, kind: input, shape index: {}]
  %s1 = inlined_call_operand.vmem [shape: f32[6,32], index: 1, kind: input, shape index: {}]
  %s2 = inlined_call_operand.vmem [shape: f32[1,32], index: 2, kind: input, shape index: {}]
  %s3 = inlined_call_operand.vmem [shape: f32[32,32], index: 3, kind: input, shape index: {}]
  %s4 = inlined_call_operand.vmem [shape: f32[1,32], index: 4, kind: input, shape index: {}]
  %s5 = inlined_call_operand.vmem [shape: f32[32,2], index: 5, kind: input, shape index: {}]
  %s6 = inlined_call_operand.vmem [shape: f32[1,2], index: 6, kind: input, shape index: {}]
  %s7 = inlined_call_operand.vmem [shape: f32[40,40], index: 7, kind: input, shape index: {}]
  %s8 = inlined_call_operand.vmem [shape: f32[80,2], index: 8, kind: output, shape index: {0}]
  %s9 = inlined_call_operand.vmem [shape: f32[80,2], index: 9, kind: output, shape index: {1}]
  %10 = xla_tuple %s8, %s9
  %s11 = sld [smem:[#allocation0]]
  $region73: #{tpu_custom_call.1} parent=0
    _
  %s13 = ssub.s32 1, %s11
  %s14 = scalar_select 0, %s13, %s11
  loop: start=0, step=1, limit=4
  $region2: #{tpu_custom_call.1} parent=0 // loop_pre_header
    _
  $region3: #{tpu_custom_call.1} parent=0 // loop_header
    %s16 = sphi 0, %s20
    %p17 = scmp.ge.s32.totalorder %s16, 4
    %s26 = sphi 0, %s28
    %s29 = sphi 0, %s26
    %s30 = sphi 0, %s29
    %s46 = sphi 0, %s30
    %s50 = sphi 0, %s50
    %s52 = sphi 0, %s50
    %s53 = sphi 0, %s52
    %s67 = sphi 0, %s53
    %s71 = sphi 0, %s71
    %s73 = sphi 0, %s71
    %s74 = sphi 0, %s73
    %s88 = sphi 0, %s74
    %s92 = sphi 0, %s92
    %s94 = sphi 0, %s92
    %s95 = sphi 0, %s94
    %s109 = sphi 0, %s95
    %s113 = sphi 0, %s113
    %s115 = sphi 0, %s113
    %s116 = sphi 0, %s115
    %s130 = sphi 0, %s116
    %s134 = sphi 0, %s134
    %s136 = sphi 0, %s134
    %s137 = sphi 0, %s136
    %s151 = sphi 0, %s137
    %s155 = sphi 0, %s155
    %s157 = sphi 0, %s155
    %s158 = sphi 0, %s157
    %s172 = sphi 0, %s158
    %s176 = sphi 0, %s176
    %s178 = sphi 0, %s176
    %s179 = sphi 0, %s178
    %s193 = sphi 0, %s179
    %s199 = sphi 0, %s201
    %s202 = sphi 0, %s199
    %s203 = sphi 0, %s202
    %s219 = sphi 0, %s203
    %s225 = sphi 0, %s227
    %s228 = sphi 0, %s225
    %s229 = sphi 0, %s228
    %s245 = sphi 0, %s229
  $region4: #{tpu_custom_call.1} parent=0 // loop_header_branch
    %19 = sbr.rel (%p17) target = $region8
  $region5: #{tpu_custom_call.1} parent=0 // loop_body
    %s21 = ssub.s32 %s16, 1
    %s22 = ssub.s32 %s16, 2
    %s23 = sadd.s32 %s16, 1
    %s24 = ssub.s32 %s16, %s23
    %p25 = scmp.eq.s32.totalorder %s24, 0
    %s27 = sadd.s32 %s26, 1
    %s28 = scalar_select %p25, %s26, %s27
    %p31 = pneg %p25
    %p32 = scmp.eq.s32.totalorder %s16, 1
    %p33 = por %p31, %p32
    %p34 = scmp.ne.s32.totalorder %s26, %s29
    %p35 = scmp.eq.s32.totalorder %s16, 0
    %p36 = por %p34, %p35
    %p37 = scmp.ne.s32.totalorder %s26, %s29
    %p38 = scmp.eq.s32.totalorder %s21, 1
    %p39 = por %p37, %p38
    %p40 = scmp.ne.s32.totalorder %s29, %s30
    %p41 = scmp.eq.s32.totalorder %s21, 0
    %p42 = por %p40, %p41
    %p43 = scmp.ne.s32.totalorder %s29, %s30
    %p44 = scmp.eq.s32.totalorder %s22, 1
    %p45 = por %p43, %p44
    %p47 = scmp.ne.s32.totalorder %s30, %s46
    %p48 = scmp.eq.s32.totalorder %s22, 0
    %p49 = por %p47, %p48
    %s51 = sadd.s32 %s50, 1
    %p54 = scmp.eq.s32.totalorder %s16, 1
    %p55 = scmp.ne.s32.totalorder %s50, %s52
    %p56 = scmp.eq.s32.totalorder %s16, 0
    %p57 = por %p55, %p56
    %p58 = scmp.ne.s32.totalorder %s50, %s52
    %p59 = scmp.eq.s32.totalorder %s21, 1
    %p60 = por %p58, %p59
    %p61 = scmp.ne.s32.totalorder %s52, %s53
    %p62 = scmp.eq.s32.totalorder %s21, 0
    %p63 = por %p61, %p62
    %p64 = scmp.ne.s32.totalorder %s52, %s53
    %p65 = scmp.eq.s32.totalorder %s22, 1
    %p66 = por %p64, %p65
    %p68 = scmp.ne.s32.totalorder %s53, %s67
    %p69 = scmp.eq.s32.totalorder %s22, 0
    %p70 = por %p68, %p69
    %s72 = sadd.s32 %s71, 1
    %p75 = scmp.eq.s32.totalorder %s16, 1
    %p76 = scmp.ne.s32.totalorder %s71, %s73
    %p77 = scmp.eq.s32.totalorder %s16, 0
    %p78 = por %p76, %p77
    %p79 = scmp.ne.s32.totalorder %s71, %s73
    %p80 = scmp.eq.s32.totalorder %s21, 1
    %p81 = por %p79, %p80
    %p82 = scmp.ne.s32.totalorder %s73, %s74
    %p83 = scmp.eq.s32.totalorder %s21, 0
    %p84 = por %p82, %p83
    %p85 = scmp.ne.s32.totalorder %s73, %s74
    %p86 = scmp.eq.s32.totalorder %s22, 1
    %p87 = por %p85, %p86
    %p89 = scmp.ne.s32.totalorder %s74, %s88
    %p90 = scmp.eq.s32.totalorder %s22, 0
    %p91 = por %p89, %p90
    %s93 = sadd.s32 %s92, 1
    %p96 = scmp.eq.s32.totalorder %s16, 1
    %p97 = scmp.ne.s32.totalorder %s92, %s94
    %p98 = scmp.eq.s32.totalorder %s16, 0
    %p99 = por %p97, %p98
    %p100 = scmp.ne.s32.totalorder %s92, %s94
    %p101 = scmp.eq.s32.totalorder %s21, 1
    %p102 = por %p100, %p101
    %p103 = scmp.ne.s32.totalorder %s94, %s95
    %p104 = scmp.eq.s32.totalorder %s21, 0
    %p105 = por %p103, %p104
    %p106 = scmp.ne.s32.totalorder %s94, %s95
    %p107 = scmp.eq.s32.totalorder %s22, 1
    %p108 = por %p106, %p107
    %p110 = scmp.ne.s32.totalorder %s95, %s109
    %p111 = scmp.eq.s32.totalorder %s22, 0
    %p112 = por %p110, %p111
    %s114 = sadd.s32 %s113, 1
    %p117 = scmp.eq.s32.totalorder %s16, 1
    %p118 = scmp.ne.s32.totalorder %s113, %s115
    %p119 = scmp.eq.s32.totalorder %s16, 0
    %p120 = por %p118, %p119
    %p121 = scmp.ne.s32.totalorder %s113, %s115
    %p122 = scmp.eq.s32.totalorder %s21, 1
    %p123 = por %p121, %p122
    %p124 = scmp.ne.s32.totalorder %s115, %s116
    %p125 = scmp.eq.s32.totalorder %s21, 0
    %p126 = por %p124, %p125
    %p127 = scmp.ne.s32.totalorder %s115, %s116
    %p128 = scmp.eq.s32.totalorder %s22, 1
    %p129 = por %p127, %p128
    %p131 = scmp.ne.s32.totalorder %s116, %s130
    %p132 = scmp.eq.s32.totalorder %s22, 0
    %p133 = por %p131, %p132
    %s135 = sadd.s32 %s134, 1
    %p138 = scmp.eq.s32.totalorder %s16, 1
    %p139 = scmp.ne.s32.totalorder %s134, %s136
    %p140 = scmp.eq.s32.totalorder %s16, 0
    %p141 = por %p139, %p140
    %p142 = scmp.ne.s32.totalorder %s134, %s136
    %p143 = scmp.eq.s32.totalorder %s21, 1
    %p144 = por %p142, %p143
    %p145 = scmp.ne.s32.totalorder %s136, %s137
    %p146 = scmp.eq.s32.totalorder %s21, 0
    %p147 = por %p145, %p146
    %p148 = scmp.ne.s32.totalorder %s136, %s137
    %p149 = scmp.eq.s32.totalorder %s22, 1
    %p150 = por %p148, %p149
    %p152 = scmp.ne.s32.totalorder %s137, %s151
    %p153 = scmp.eq.s32.totalorder %s22, 0
    %p154 = por %p152, %p153
    %s156 = sadd.s32 %s155, 1
    %p159 = scmp.eq.s32.totalorder %s16, 1
    %p160 = scmp.ne.s32.totalorder %s155, %s157
    %p161 = scmp.eq.s32.totalorder %s16, 0
    %p162 = por %p160, %p161
    %p163 = scmp.ne.s32.totalorder %s155, %s157
    %p164 = scmp.eq.s32.totalorder %s21, 1
    %p165 = por %p163, %p164
    %p166 = scmp.ne.s32.totalorder %s157, %s158
    %p167 = scmp.eq.s32.totalorder %s21, 0
    %p168 = por %p166, %p167
    %p169 = scmp.ne.s32.totalorder %s157, %s158
    %p170 = scmp.eq.s32.totalorder %s22, 1
    %p171 = por %p169, %p170
    %p173 = scmp.ne.s32.totalorder %s158, %s172
    %p174 = scmp.eq.s32.totalorder %s22, 0
    %p175 = por %p173, %p174
    %s177 = sadd.s32 %s176, 1
    %p180 = scmp.eq.s32.totalorder %s16, 1
    %p181 = scmp.ne.s32.totalorder %s176, %s178
    %p182 = scmp.eq.s32.totalorder %s16, 0
    %p183 = por %p181, %p182
    %p184 = scmp.ne.s32.totalorder %s176, %s178
    %p185 = scmp.eq.s32.totalorder %s21, 1
    %p186 = por %p184, %p185
    %p187 = scmp.ne.s32.totalorder %s178, %s179
    %p188 = scmp.eq.s32.totalorder %s21, 0
    %p189 = por %p187, %p188
    %p190 = scmp.ne.s32.totalorder %s178, %s179
    %p191 = scmp.eq.s32.totalorder %s22, 1
    %p192 = por %p190, %p191
    %p194 = scmp.ne.s32.totalorder %s179, %s193
    %p195 = scmp.eq.s32.totalorder %s22, 0
    %p196 = por %p194, %p195
    %s197 = ssub.s32 %s16, %s23
    %p198 = scmp.eq.s32.totalorder %s197, 0
    %s200 = sadd.s32 %s199, 1
    %s201 = scalar_select %p198, %s199, %s200
    %p204 = pneg %p198
    %p205 = scmp.eq.s32.totalorder %s16, 1
    %p206 = por %p204, %p205
    %p207 = scmp.ne.s32.totalorder %s199, %s202
    %p208 = scmp.eq.s32.totalorder %s16, 0
    %p209 = por %p207, %p208
    %p210 = scmp.ne.s32.totalorder %s199, %s202
    %p211 = scmp.eq.s32.totalorder %s21, 1
    %p212 = por %p210, %p211
    %p213 = scmp.ne.s32.totalorder %s202, %s203
    %p214 = scmp.eq.s32.totalorder %s21, 0
    %p215 = por %p213, %p214
    %p216 = scmp.ne.s32.totalorder %s202, %s203
    %p217 = scmp.eq.s32.totalorder %s22, 1
    %p218 = por %p216, %p217
    %p220 = scmp.ne.s32.totalorder %s203, %s219
    %p221 = scmp.eq.s32.totalorder %s22, 0
    %p222 = por %p220, %p221
    %s223 = ssub.s32 %s16, %s23
    %p224 = scmp.eq.s32.totalorder %s223, 0
    %s226 = sadd.s32 %s225, 1
    %s227 = scalar_select %p224, %s225, %s226
    %p230 = pneg %p224
    %p231 = scmp.eq.s32.totalorder %s16, 1
    %p232 = por %p230, %p231
    %p233 = scmp.ne.s32.totalorder %s225, %s228
    %p234 = scmp.eq.s32.totalorder %s16, 0
    %p235 = por %p233, %p234
    %p236 = scmp.ne.s32.totalorder %s225, %s228
    %p237 = scmp.eq.s32.totalorder %s21, 1
    %p238 = por %p236, %p237
    %p239 = scmp.ne.s32.totalorder %s228, %s229
    %p240 = scmp.eq.s32.totalorder %s21, 0
    %p241 = por %p239, %p240
    %p242 = scmp.ne.s32.totalorder %s228, %s229
    %p243 = scmp.eq.s32.totalorder %s22, 1
    %p244 = por %p242, %p243
    %p246 = scmp.ne.s32.totalorder %s229, %s245
    %p247 = scmp.eq.s32.totalorder %s22, 0
    %p248 = por %p246, %p247
    %p249 = scmp.le.s32.totalorder 1, %s16
    %p250 = scmp.lt.s32.totalorder %s16, 3
    %p251 = pnand %p249, %p250
    %p252 = pneg %p251
    // Predicated region
    $region9: #{tpu_custom_call.1} parent=5 // pred_check
      _
    $region10: #{tpu_custom_call.1} parent=5 // pred_check_branch
      %254 = sbr.rel (%p251) target = $region12
    $region11: #{tpu_custom_call.1} parent=5 // pred_region
      %s255 = ssub.s32 %s16, 1
      // Predicated region
      $region13: #{tpu_custom_call.1} parent=11 // pred_check
        %p256 = pneg %p63
      $region14: #{tpu_custom_call.1} parent=11 // pred_check_branch
        %258 = sbr.rel (%p256) target = $region16
      $region15: #{tpu_custom_call.1} parent=11 // pred_region
        _
      $region16: #{tpu_custom_call.1} parent=11 // pred_fallthru
        _
      // Predicated region
      $region17: #{tpu_custom_call.1} parent=11 // pred_check
        %p259 = pneg %p84
      $region18: #{tpu_custom_call.1} parent=11 // pred_check_branch
        %261 = sbr.rel (%p259) target = $region20
      $region19: #{tpu_custom_call.1} parent=11 // pred_region
        _
      $region20: #{tpu_custom_call.1} parent=11 // pred_fallthru
        _
      // Predicated region
      $region21: #{tpu_custom_call.1} parent=11 // pred_check
        %p262 = pneg %p105
      $region22: #{tpu_custom_call.1} parent=11 // pred_check_branch
        %264 = sbr.rel (%p262) target = $region24
      $region23: #{tpu_custom_call.1} parent=11 // pred_region
        _
      $region24: #{tpu_custom_call.1} parent=11 // pred_fallthru
        _
      // Predicated region
      $region25: #{tpu_custom_call.1} parent=11 // pred_check
        %p265 = pneg %p126
      $region26: #{tpu_custom_call.1} parent=11 // pred_check_branch
        %267 = sbr.rel (%p265) target = $region28
      $region27: #{tpu_custom_call.1} parent=11 // pred_region
        _
      $region28: #{tpu_custom_call.1} parent=11 // pred_fallthru
        _
      // Predicated region
      $region29: #{tpu_custom_call.1} parent=11 // pred_check
        %p268 = pneg %p147
      $region30: #{tpu_custom_call.1} parent=11 // pred_check_branch
        %270 = sbr.rel (%p268) target = $region32
      $region31: #{tpu_custom_call.1} parent=11 // pred_region
        _
      $region32: #{tpu_custom_call.1} parent=11 // pred_fallthru
        _
      // Predicated region
      $region33: #{tpu_custom_call.1} parent=11 // pred_check
        %p271 = pneg %p168
      $region34: #{tpu_custom_call.1} parent=11 // pred_check_branch
        %273 = sbr.rel (%p271) target = $region36
      $region35: #{tpu_custom_call.1} parent=11 // pred_region
        _
      $region36: #{tpu_custom_call.1} parent=11 // pred_fallthru
        _
      // Predicated region
      $region37: #{tpu_custom_call.1} parent=11 // pred_check
        %p274 = pneg %p189
      $region38: #{tpu_custom_call.1} parent=11 // pred_check_branch
        %276 = sbr.rel (%p274) target = $region40
      $region39: #{tpu_custom_call.1} parent=11 // pred_region
        _
      $region40: #{tpu_custom_call.1} parent=11 // pred_fallthru
        _
    $region12: #{tpu_custom_call.1} parent=5 // pred_fallthru
      _
    %p277 = scmp.lt.s32.totalorder %s16, 2
    // Predicated region
    $region41: #{tpu_custom_call.1} parent=5 // pred_check
      %p278 = pneg %p277
    $region42: #{tpu_custom_call.1} parent=5 // pred_check_branch
      %280 = sbr.rel (%p278) target = $region44
    $region43: #{tpu_custom_call.1} parent=5 // pred_region
      // Predicated region
      $region45: #{tpu_custom_call.1} parent=43 // pred_check
        %p281 = pneg %p36
      $region46: #{tpu_custom_call.1} parent=43 // pred_check_branch
        %283 = sbr.rel (%p281) target = $region48
      $region47: #{tpu_custom_call.1} parent=43 // pred_region
        %s284 = smul.u32 5, %s16
        %p285 = scmp.lt.s32.totalorder %s284, 9
        %s286 = scalar_select %p285, %s284, 9
        %s287 = smul.addr %s286, 8
        %s288 = scalar_lea.vmem %s0, %s287
        %s289 = smul.u32 5, %s16
      $region48: #{tpu_custom_call.1} parent=43 // pred_fallthru
        _
    $region44: #{tpu_custom_call.1} parent=5 // pred_fallthru
      _
    %p290 = scmp.le.s32.totalorder 1, %s16
    %p291 = scmp.lt.s32.totalorder %s16, 3
    %p292 = pnand %p290, %p291
    %p293 = pneg %p292
    // Predicated region
    $region49: #{tpu_custom_call.1} parent=5 // pred_check
      _
    $region50: #{tpu_custom_call.1} parent=5 // pred_check_branch
      %295 = sbr.rel (%p292) target = $region52
    $region51: #{tpu_custom_call.1} parent=5 // pred_region
      %s296 = ssub.s32 %s16, 1
      %s297 = smul.u32 5, %s21
      %p298 = scmp.lt.s32.totalorder %s297, 9
      %s299 = scalar_select %p298, %s297, 9
      %s300 = smul.addr %s299, 8
      %s301 = scalar_lea.vmem %s0, %s300
      %p302 = pneg %p42
      %p303 = pneg %p39
      %p304 = pneg %p63
      %p305 = pneg %p60
      %p306 = pneg %p84
      %p307 = pneg %p81
      %p308 = pneg %p105
      %p309 = pneg %p102
      %p310 = pneg %p126
      %p311 = pneg %p123
      %p312 = pneg %p147
      %p313 = pneg %p144
      %p314 = pneg %p168
      %p315 = pneg %p165
      %p316 = pneg %p189
      %p317 = pneg %p186
      %p318 = pneg %p215
      %p319 = pneg %p212
      %s320 = smul.u32 5, %s21
      %p321 = scmp.lt.s32.totalorder %s320, 9
      %s322 = scalar_select %p321, %s320, 9
      %s323 = smul.addr %s322, 8
      %s324 = scalar_lea.vmem %s8, %s323
      %p325 = pneg %p241
      %p326 = pneg %p238
      %s327 = smul.u32 5, %s21
      %p328 = scmp.lt.s32.totalorder %s327, 9
      %s329 = scalar_select %p328, %s327, 9
      %s330 = smul.addr %s329, 8
      %s331 = scalar_lea.vmem %s9, %s330
      %s332 = smul.u32 5, %s21
      %p333 = scmp.lt.s32.totalorder %s332, 9
      %s334 = scalar_select %p333, %s332, 9
      %s335 = smul.addr %s334, 8
      %s336 = scalar_lea.vmem %s0, %s335
      %s337 = smul.u32 5, %s21
      %s338 = smul.u32 5, %s21
      %p339 = scmp.lt.s32.totalorder %s338, 9
      %s340 = scalar_select %p339, %s338, 9
      %s341 = smul.addr %s340, 8
      %s342 = scalar_lea.vmem %s8, %s341
      %s343 = smul.u32 5, %s21
      %s344 = smul.u32 5, %s21
      %p345 = scmp.lt.s32.totalorder %s344, 9
      %s346 = scalar_select %p345, %s344, 9
      %s347 = smul.addr %s346, 8
      %s348 = scalar_lea.vmem %s9, %s347
      %s349 = smul.u32 5, %s21
      %v350 = vld [vmem:[%s336] sm:$0xff]
      %v351 = vld [vmem:[%s336 + $0x8] sm:$0xff]
      %v352 = vld [vmem:[%s336 + $0x10] sm:$0xff]
      %v353 = vld [vmem:[%s336 + $0x18] sm:$0xff]
      %v354 = vld [vmem:[%s336 + $0x20] sm:$0xff]
      %v355 = vld [vmem:[%s1] sm:$0x3f]
      %v356 = vld [vmem:[%s2] sm:$0x1]
      %v358 = vlaneseq
      %v359 = vshrl.u32 %v358, 7
      %v360 = vsub.s32 0, %v359
      %v361 = vrot.slane %v356, %v360
      %vm363 = vcmask 48128
      %v365 = vsel %vm363, %v350, 0
      %v368 = vsel %vm363, %v351, 0
      %v371 = vsel %vm363, %v352, 0
      %v374 = vsel %vm363, %v353, 0
      %v377 = vsel %vm363, %v354, 0
      %vm379 = vcmask 1045504
      %v381 = vsel %vm379, %v355, 0
      %383 = vmatprep.subr.mxu0 0.0
      %384 = vmatpush1.msra.mxu0 %v381
      %385 = vmatprep.subr.mxu0 0.0
      %386 = vmatpush1.msra.mxu0 0.0
      %387 = vmatprep.subr.mxu0 0.0
      %388 = vmatpush1.msra.mxu0 0.0
      %389 = vmatprep.subr.mxu0 0.0
      %390 = vmatpush1.msra.mxu0 0.0
      %391 = vmatprep.subr.mxu0 0.0
      %392 = vmatpush1.msra.mxu0 0.0
      %393 = vmatprep.subr.mxu0 0.0
      %394 = vmatpush1.msra.mxu0 0.0
      %395 = vmatprep.subr.mxu0 0.0
      %396 = vmatpush1.msra.mxu0 0.0
      %397 = vmatprep.subr.mxu0 0.0
      %398 = vmatpush1.msra.mxu0 0.0
      %399 = vmatprep.subr.mxu0 0.0
      %400 = vmatpush1.msra.mxu0 0.0
      %401 = vmatprep.subr.mxu0 0.0
      %402 = vmatpush1.msra.mxu0 0.0
      %403 = vmatprep.subr.mxu0 0.0
      %404 = vmatpush1.msra.mxu0 0.0
      %405 = vmatprep.subr.mxu0 0.0
      %406 = vmatpush1.msra.mxu0 0.0
      %407 = vmatprep.subr.mxu0 0.0
      %408 = vmatpush1.msra.mxu0 0.0
      %409 = vmatprep.subr.mxu0 0.0
      %410 = vmatpush1.msra.mxu0 0.0
      %411 = vmatprep.subr.mxu0 0.0
      %412 = vmatpush1.msra.mxu0 0.0
      %413 = vmatprep.subr.mxu0 0.0
      %414 = vmatpush1.msra.mxu0 0.0
      %415 = vmatprep.subr.mxu0 0.0
      %416 = vmatpush1.msra.mxu0 0.0
      %417 = vmatprep.subr.mxu0 0.0
      %418 = vmatpush1.msra.mxu0 0.0
      %419 = vmatprep.subr.mxu0 0.0
      %420 = vmatpush1.msra.mxu0 0.0
      %421 = vmatprep.subr.mxu0 0.0
      %422 = vmatpush1.msra.mxu0 0.0
      %423 = vmatprep.subr.mxu0 0.0
      %424 = vmatpush1.msra.mxu0 0.0
      %425 = vmatprep.subr.mxu0 0.0
      %426 = vmatpush1.msra.mxu0 0.0
      %427 = vmatprep.subr.mxu0 0.0
      %428 = vmatpush1.msra.mxu0 0.0
      %429 = vmatprep.subr.mxu0 0.0
      %430 = vmatpush1.msra.mxu0 0.0
      %431 = vmatprep.subr.mxu0 0.0
      %432 = vmatpush1.msra.mxu0 0.0
      %433 = vmatprep.subr.mxu0 0.0
      %434 = vmatpush1.msra.mxu0 0.0
      %435 = vmatprep.subr.mxu0 0.0
      %436 = vmatpush1.msra.mxu0 0.0
      %437 = vmatprep.subr.mxu0 0.0
      %438 = vmatpush1.msra.mxu0 0.0
      %439 = vmatprep.subr.mxu0 0.0
      %440 = vmatpush1.msra.mxu0 0.0
      %441 = vmatprep.subr.mxu0 0.0
      %442 = vmatpush1.msra.mxu0 0.0
      %443 = vmatprep.subr.mxu0 0.0
      %444 = vmatpush1.msra.mxu0 0.0
      %445 = vmatprep.subr.mxu0 0.0
      %446 = vmatpush1.msra.mxu0 0.0
      %447 = vmatprep.mubr.f32.mxu0 0.0
      %448 = vmatmul.mubr.f32.gmra.mrb[0].mxu0 %v365
      %v449 = vpop.f32.mrb[0].mxu0
      %v450 = vadd.f32 %v361, %v449
      %v451 = vpop.f32.mrb[0].mxu0
      %452 = vmatprep.mubr.f32.mxu0 0.0
      %453 = vmatmul.mubr.f32.gmra.mrb[0].mxu0 %v368
      %v454 = vpop.f32.mrb[0].mxu0
      %v455 = vadd.f32 %v361, %v454
      %v456 = vpop.f32.mrb[0].mxu0
      %457 = vmatprep.mubr.f32.mxu0 0.0
      %458 = vmatmul.mubr.f32.gmra.mrb[0].mxu0 %v371
      %v459 = vpop.f32.mrb[0].mxu0
      %v460 = vadd.f32 %v361, %v459
      %v461 = vpop.f32.mrb[0].mxu0
      %462 = vmatprep.mubr.f32.mxu0 0.0
      %463 = vmatmul.mubr.f32.gmra.mrb[0].mxu0 %v374
      %v464 = vpop.f32.mrb[0].mxu0
      %v465 = vadd.f32 %v361, %v464
      %v466 = vpop.f32.mrb[0].mxu0
      %467 = vmatprep.mubr.f32.mxu0 0.0
      %468 = vmatmul.mubr.f32.gmra.mrb[0].mxu0 %v377
      %v469 = vpop.f32.mrb[0].mxu0
      %v470 = vadd.f32 %v361, %v469
      %v471 = vpop.f32.mrb[0].mxu0
      %472 = vdwg.mxu0
      %v473 = vmax.f32 %v450, 0.0
      %v474 = vmax.f32 %v455, 0.0
      %v475 = vmax.f32 %v460, 0.0
      %v476 = vmax.f32 %v465, 0.0
      %v477 = vmax.f32 %v470, 0.0
      %v478 = vld [vmem:[%s3] sm:$0xff]
      %v479 = vld [vmem:[%s3 + $0x8] sm:$0xff]
      %v480 = vld [vmem:[%s3 + $0x10] sm:$0xff]
      %v481 = vld [vmem:[%s3 + $0x18] sm:$0xff]
      %v482 = vld [vmem:[%s4] sm:$0x1]
      %v484 = vlaneseq
      %v485 = vshrl.u32 %v484, 7
      %v486 = vsub.s32 0, %v485
      %v487 = vrot.slane %v482, %v486
      %vm489 = vcmask 261120
      %v491 = vsel %vm489, %v473, 0
      %v494 = vsel %vm489, %v474, 0
      %v497 = vsel %vm489, %v475, 0
      %v500 = vsel %vm489, %v476, 0
      %v503 = vsel %vm489, %v477, 0
      %505 = vmatprep.subr.mxu0 0.0
      %506 = vmatpush1.msra.mxu0 %v478
      %507 = vmatprep.subr.mxu0 0.0
      %508 = vmatpush1.msra.mxu0 %v479
      %509 = vmatprep.subr.mxu0 0.0
      %510 = vmatpush1.msra.mxu0 %v480
      %511 = vmatprep.subr.mxu0 0.0
      %512 = vmatpush1.msra.mxu0 %v481
      %513 = vmatprep.subr.mxu0 0.0
      %514 = vmatpush1.msra.mxu0 0.0
      %515 = vmatprep.subr.mxu0 0.0
      %516 = vmatpush1.msra.mxu0 0.0
      %517 = vmatprep.subr.mxu0 0.0
      %518 = vmatpush1.msra.mxu0 0.0
      %519 = vmatprep.subr.mxu0 0.0
      %520 = vmatpush1.msra.mxu0 0.0
      %521 = vmatprep.subr.mxu0 0.0
      %522 = vmatpush1.msra.mxu0 0.0
      %523 = vmatprep.subr.mxu0 0.0
      %524 = vmatpush1.msra.mxu0 0.0
      %525 = vmatprep.subr.mxu0 0.0
      %526 = vmatpush1.msra.mxu0 0.0
      %527 = vmatprep.subr.mxu0 0.0
      %528 = vmatpush1.msra.mxu0 0.0
      %529 = vmatprep.subr.mxu0 0.0
      %530 = vmatpush1.msra.mxu0 0.0
      %531 = vmatprep.subr.mxu0 0.0
      %532 = vmatpush1.msra.mxu0 0.0
      %533 = vmatprep.subr.mxu0 0.0
      %534 = vmatpush1.msra.mxu0 0.0
      %535 = vmatprep.subr.mxu0 0.0
      %536 = vmatpush1.msra.mxu0 0.0
      %537 = vmatprep.subr.mxu0 0.0
      %538 = vmatpush1.msra.mxu0 0.0
      %539 = vmatprep.subr.mxu0 0.0
      %540 = vmatpush1.msra.mxu0 0.0
      %541 = vmatprep.subr.mxu0 0.0
      %542 = vmatpush1.msra.mxu0 0.0
      %543 = vmatprep.subr.mxu0 0.0
      %544 = vmatpush1.msra.mxu0 0.0
      %545 = vmatprep.subr.mxu0 0.0
      %546 = vmatpush1.msra.mxu0 0.0
      %547 = vmatprep.subr.mxu0 0.0
      %548 = vmatpush1.msra.mxu0 0.0
      %549 = vmatprep.subr.mxu0 0.0
      %550 = vmatpush1.msra.mxu0 0.0
      %551 = vmatprep.subr.mxu0 0.0
      %552 = vmatpush1.msra.mxu0 0.0
      %553 = vmatprep.subr.mxu0 0.0
      %554 = vmatpush1.msra.mxu0 0.0
      %555 = vmatprep.subr.mxu0 0.0
      %556 = vmatpush1.msra.mxu0 0.0
      %557 = vmatprep.subr.mxu0 0.0
      %558 = vmatpush1.msra.mxu0 0.0
      %559 = vmatprep.subr.mxu0 0.0
      %560 = vmatpush1.msra.mxu0 0.0
      %561 = vmatprep.subr.mxu0 0.0
      %562 = vmatpush1.msra.mxu0 0.0
      %563 = vmatprep.subr.mxu0 0.0
      %564 = vmatpush1.msra.mxu0 0.0
      %565 = vmatprep.subr.mxu0 0.0
      %566 = vmatpush1.msra.mxu0 0.0
      %567 = vmatprep.subr.mxu0 0.0
      %568 = vmatpush1.msra.mxu0 0.0
      %569 = vmatprep.mubr.f32.mxu0 0.0
      %570 = vmatmul.mubr.f32.gmra.mrb[0].mxu0 %v491
      %v571 = vpop.f32.mrb[0].mxu0
      %v572 = vadd.f32 %v487, %v571
      %v573 = vpop.f32.mrb[0].mxu0
      %574 = vmatprep.mubr.f32.mxu0 0.0
      %575 = vmatmul.mubr.f32.gmra.mrb[0].mxu0 %v494
      %v576 = vpop.f32.mrb[0].mxu0
      %v577 = vadd.f32 %v487, %v576
      %v578 = vpop.f32.mrb[0].mxu0
      %579 = vmatprep.mubr.f32.mxu0 0.0
      %580 = vmatmul.mubr.f32.gmra.mrb[0].mxu0 %v497
      %v581 = vpop.f32.mrb[0].mxu0
      %v582 = vadd.f32 %v487, %v581
      %v583 = vpop.f32.mrb[0].mxu0
      %584 = vmatprep.mubr.f32.mxu0 0.0
      %585 = vmatmul.mubr.f32.gmra.mrb[0].mxu0 %v500
      %v586 = vpop.f32.mrb[0].mxu0
      %v587 = vadd.f32 %v487, %v586
      %v588 = vpop.f32.mrb[0].mxu0
      %589 = vmatprep.mubr.f32.mxu0 0.0
      %590 = vmatmul.mubr.f32.gmra.mrb[0].mxu0 %v503
      %v591 = vpop.f32.mrb[0].mxu0
      %v592 = vadd.f32 %v487, %v591
      %v593 = vpop.f32.mrb[0].mxu0
      %594 = vdwg.mxu0
      %v595 = vmax.f32 %v572, 0.0
      %v596 = vmax.f32 %v577, 0.0
      %v597 = vmax.f32 %v582, 0.0
      %v598 = vmax.f32 %v587, 0.0
      %v599 = vmax.f32 %v592, 0.0
      %v600 = vld [vmem:[%s5] sm:$0xff]
      %v601 = vld [vmem:[%s5 + $0x8] sm:$0xff]
      %v602 = vld [vmem:[%s5 + $0x10] sm:$0xff]
      %v603 = vld [vmem:[%s5 + $0x18] sm:$0xff]
      %v604 = vld [vmem:[%s6] sm:$0x1]
      %v606 = vlaneseq
      %v607 = vshrl.u32 %v606, 7
      %v608 = vsub.s32 0, %v607
      %v609 = vrot.slane %v604, %v608
      %v612 = vsel %vm489, %v595, 0
      %v615 = vsel %vm489, %v596, 0
      %v618 = vsel %vm489, %v597, 0
      %v621 = vsel %vm489, %v598, 0
      %v624 = vsel %vm489, %v599, 0
      %626 = vmatprep.subr.mxu0 0.0
      %627 = vmatpush1.msra.mxu0 %v600
      %628 = vmatprep.subr.mxu0 0.0
      %629 = vmatpush1.msra.mxu0 %v601
      %630 = vmatprep.subr.mxu0 0.0
      %631 = vmatpush1.msra.mxu0 %v602
      %632 = vmatprep.subr.mxu0 0.0
      %633 = vmatpush1.msra.mxu0 %v603
      %634 = vmatprep.subr.mxu0 0.0
      %635 = vmatpush1.msra.mxu0 0.0
      %636 = vmatprep.subr.mxu0 0.0
      %637 = vmatpush1.msra.mxu0 0.0
      %638 = vmatprep.subr.mxu0 0.0
      %639 = vmatpush1.msra.mxu0 0.0
      %640 = vmatprep.subr.mxu0 0.0
      %641 = vmatpush1.msra.mxu0 0.0
      %642 = vmatprep.subr.mxu0 0.0
      %643 = vmatpush1.msra.mxu0 0.0
      %644 = vmatprep.subr.mxu0 0.0
      %645 = vmatpush1.msra.mxu0 0.0
      %646 = vmatprep.subr.mxu0 0.0
      %647 = vmatpush1.msra.mxu0 0.0
      %648 = vmatprep.subr.mxu0 0.0
      %649 = vmatpush1.msra.mxu0 0.0
      %650 = vmatprep.subr.mxu0 0.0
      %651 = vmatpush1.msra.mxu0 0.0
      %652 = vmatprep.subr.mxu0 0.0
      %653 = vmatpush1.msra.mxu0 0.0
      %654 = vmatprep.subr.mxu0 0.0
      %655 = vmatpush1.msra.mxu0 0.0
      %656 = vmatprep.subr.mxu0 0.0
      %657 = vmatpush1.msra.mxu0 0.0
      %658 = vmatprep.subr.mxu0 0.0
      %659 = vmatpush1.msra.mxu0 0.0
      %660 = vmatprep.subr.mxu0 0.0
      %661 = vmatpush1.msra.mxu0 0.0
      %662 = vmatprep.subr.mxu0 0.0
      %663 = vmatpush1.msra.mxu0 0.0
      %664 = vmatprep.subr.mxu0 0.0
      %665 = vmatpush1.msra.mxu0 0.0
      %666 = vmatprep.subr.mxu0 0.0
      %667 = vmatpush1.msra.mxu0 0.0
      %668 = vmatprep.subr.mxu0 0.0
      %669 = vmatpush1.msra.mxu0 0.0
      %670 = vmatprep.subr.mxu0 0.0
      %671 = vmatpush1.msra.mxu0 0.0
      %672 = vmatprep.subr.mxu0 0.0
      %673 = vmatpush1.msra.mxu0 0.0
      %674 = vmatprep.subr.mxu0 0.0
      %675 = vmatpush1.msra.mxu0 0.0
      %676 = vmatprep.subr.mxu0 0.0
      %677 = vmatpush1.msra.mxu0 0.0
      %678 = vmatprep.subr.mxu0 0.0
      %679 = vmatpush1.msra.mxu0 0.0
      %680 = vmatprep.subr.mxu0 0.0
      %681 = vmatpush1.msra.mxu0 0.0
      %682 = vmatprep.subr.mxu0 0.0
      %683 = vmatpush1.msra.mxu0 0.0
      %684 = vmatprep.subr.mxu0 0.0
      %685 = vmatpush1.msra.mxu0 0.0
      %686 = vmatprep.subr.mxu0 0.0
      %687 = vmatpush1.msra.mxu0 0.0
      %688 = vmatprep.subr.mxu0 0.0
      %689 = vmatpush1.msra.mxu0 0.0
      %690 = vmatprep.mubr.f32.mxu0 0.0
      %691 = vmatmul.mubr.f32.gmra.mrb[0].mxu0 %v612
      %v692 = vpop.f32.mrb[0].mxu0
      %v693 = vadd.f32 %v609, %v692
      %v694 = vpop.f32.mrb[0].mxu0
      %695 = vmatprep.mubr.f32.mxu0 0.0
      %696 = vmatmul.mubr.f32.gmra.mrb[0].mxu0 %v615
      %v697 = vpop.f32.mrb[0].mxu0
      %v698 = vadd.f32 %v609, %v697
      %v699 = vpop.f32.mrb[0].mxu0
      %700 = vmatprep.mubr.f32.mxu0 0.0
      %701 = vmatmul.mubr.f32.gmra.mrb[0].mxu0 %v618
      %v702 = vpop.f32.mrb[0].mxu0
      %v703 = vadd.f32 %v609, %v702
      %v704 = vpop.f32.mrb[0].mxu0
      %705 = vmatprep.mubr.f32.mxu0 0.0
      %706 = vmatmul.mubr.f32.gmra.mrb[0].mxu0 %v621
      %v707 = vpop.f32.mrb[0].mxu0
      %v708 = vadd.f32 %v609, %v707
      %v709 = vpop.f32.mrb[0].mxu0
      %710 = vmatprep.mubr.f32.mxu0 0.0
      %711 = vmatmul.mubr.f32.gmra.mrb[0].mxu0 %v624
      %v712 = vpop.f32.mrb[0].mxu0
      %v713 = vadd.f32 %v609, %v712
      %v714 = vpop.f32.mrb[0].mxu0
      %715 = vdwg.mxu0
      %vm716 = vcmask 15360
      %717 = vst.msk [vmem:[%s342] sm:$0xff] %vm716, %v693
      %718 = vst.msk [vmem:[%s342 + $0x8] sm:$0xff] %vm716, %v698
      %719 = vst.msk [vmem:[%s342 + $0x10] sm:$0xff] %vm716, %v703
      %720 = vst.msk [vmem:[%s342 + $0x18] sm:$0xff] %vm716, %v708
      %721 = vst.msk [vmem:[%s342 + $0x20] sm:$0xff] %vm716, %v713
      %v722 = vmax.f32 %v693, 0.0
      %v723 = vmax.f32 %v698, 0.0
      %v724 = vmax.f32 %v703, 0.0
      %v725 = vmax.f32 %v708, 0.0
      %v726 = vmax.f32 %v713, 0.0
      %v727 = vand.u32 2147483647, %v693
      %v728 = vand.u32 2147483647, %v698
      %v729 = vand.u32 2147483647, %v703
      %v730 = vand.u32 2147483647, %v708
      %v731 = vand.u32 2147483647, %v713
      %v732 = vsub.f32 0.0, %v727
      %v733 = vsub.f32 0.0, %v728
      %v734 = vsub.f32 0.0, %v729
      %v735 = vsub.f32 0.0, %v730
      %v736 = vsub.f32 0.0, %v731
      %v737 = vmul.f32 %v732, 1.442695
      %v738 = vpow.pop %v737
      %v739 = vmul.f32 %v733, 1.442695
      %v740 = vpow.pop %v739
      %v741 = vmul.f32 %v734, 1.442695
      %v742 = vpow.pop %v741
      %v743 = vmul.f32 %v735, 1.442695
      %v744 = vpow.pop %v743
      %v745 = vmul.f32 %v736, 1.442695
      %v746 = vpow.pop %v745
      %v747 = vadd.f32 %v738, 1.0
      %v748 = vlog2.pop %v747
      %v749 = vmul.f32 %v748, 0.6931472
      %v750 = vmul.f32 -0.5, %v738
      %v751 = vadd.f32 %v750, 1.0
      %v752 = vmul.f32 %v751, %v738
      %v753 = vand.u32 2147483647, %v738
      %vm754 = vcmp.lt.f32.partialorder %v753, 0.0004427343
      %v755 = vsel %vm754, %v752, %v749
      %v756 = vadd.f32 %v740, 1.0
      %v757 = vlog2.pop %v756
      %v758 = vmul.f32 %v757, 0.6931472
      %v759 = vmul.f32 -0.5, %v740
      %v760 = vadd.f32 %v759, 1.0
      %v761 = vmul.f32 %v760, %v740
      %v762 = vand.u32 2147483647, %v740
      %vm763 = vcmp.lt.f32.partialorder %v762, 0.0004427343
      %v764 = vsel %vm763, %v761, %v758
      %v765 = vadd.f32 %v742, 1.0
      %v766 = vlog2.pop %v765
      %v767 = vmul.f32 %v766, 0.6931472
      %v768 = vmul.f32 -0.5, %v742
      %v769 = vadd.f32 %v768, 1.0
      %v770 = vmul.f32 %v769, %v742
      %v771 = vand.u32 2147483647, %v742
      %vm772 = vcmp.lt.f32.partialorder %v771, 0.0004427343
      %v773 = vsel %vm772, %v770, %v767
      %v774 = vadd.f32 %v744, 1.0
      %v775 = vlog2.pop %v774
      %v776 = vmul.f32 %v775, 0.6931472
      %v777 = vmul.f32 -0.5, %v744
      %v778 = vadd.f32 %v777, 1.0
      %v779 = vmul.f32 %v778, %v744
      %v780 = vand.u32 2147483647, %v744
      %vm781 = vcmp.lt.f32.partialorder %v780, 0.0004427343
      %v782 = vsel %vm781, %v779, %v776
      %v783 = vadd.f32 %v746, 1.0
      %v784 = vlog2.pop %v783
      %v785 = vmul.f32 %v784, 0.6931472
      %v786 = vmul.f32 -0.5, %v746
      %v787 = vadd.f32 %v786, 1.0
      %v788 = vmul.f32 %v787, %v746
      %v789 = vand.u32 2147483647, %v746
      %vm790 = vcmp.lt.f32.partialorder %v789, 0.0004427343
      %v791 = vsel %vm790, %v788, %v785
      %v792 = vadd.f32 %v722, %v755
      %v793 = vadd.f32 %v723, %v764
      %v794 = vadd.f32 %v724, %v773
      %v795 = vadd.f32 %v725, %v782
      %v796 = vadd.f32 %v726, %v791
      %v797 = vld [vmem:[%s7] sm:$0xff]
      %v798 = vld [vmem:[%s7 + $0x8] sm:$0xff]
      %v799 = vld [vmem:[%s7 + $0x10] sm:$0xff]
      %v800 = vld [vmem:[%s7 + $0x18] sm:$0xff]
      %v801 = vld [vmem:[%s7 + $0x20] sm:$0xff]
      %vm802 = vcmask 326656
      %v804 = vsel %vm802, %v797, 0
      %v807 = vsel %vm802, %v798, 0
      %v810 = vsel %vm802, %v799, 0
      %v813 = vsel %vm802, %v800, 0
      %v816 = vsel %vm802, %v801, 0
      %818 = vmatprep.subr.mxu0 0.0
      %819 = vmatpush1.msra.mxu0 %v792
      %820 = vmatprep.subr.mxu0 0.0
      %821 = vmatpush1.msra.mxu0 %v793
      %822 = vmatprep.subr.mxu0 0.0
      %823 = vmatpush1.msra.mxu0 %v794
      %824 = vmatprep.subr.mxu0 0.0
      %825 = vmatpush1.msra.mxu0 %v795
      %826 = vmatprep.subr.mxu0 0.0
      %827 = vmatpush1.msra.mxu0 %v796
      %828 = vmatprep.subr.mxu0 0.0
      %829 = vmatpush1.msra.mxu0 0.0
      %830 = vmatprep.subr.mxu0 0.0
      %831 = vmatpush1.msra.mxu0 0.0
      %832 = vmatprep.subr.mxu0 0.0
      %833 = vmatpush1.msra.mxu0 0.0
      %834 = vmatprep.subr.mxu0 0.0
      %835 = vmatpush1.msra.mxu0 0.0
      %836 = vmatprep.subr.mxu0 0.0
      %837 = vmatpush1.msra.mxu0 0.0
      %838 = vmatprep.subr.mxu0 0.0
      %839 = vmatpush1.msra.mxu0 0.0
      %840 = vmatprep.subr.mxu0 0.0
      %841 = vmatpush1.msra.mxu0 0.0
      %842 = vmatprep.subr.mxu0 0.0
      %843 = vmatpush1.msra.mxu0 0.0
      %844 = vmatprep.subr.mxu0 0.0
      %845 = vmatpush1.msra.mxu0 0.0
      %846 = vmatprep.subr.mxu0 0.0
      %847 = vmatpush1.msra.mxu0 0.0
      %848 = vmatprep.subr.mxu0 0.0
      %849 = vmatpush1.msra.mxu0 0.0
      %850 = vmatprep.subr.mxu0 0.0
      %851 = vmatpush1.msra.mxu0 0.0
      %852 = vmatprep.subr.mxu0 0.0
      %853 = vmatpush1.msra.mxu0 0.0
      %854 = vmatprep.subr.mxu0 0.0
      %855 = vmatpush1.msra.mxu0 0.0
      %856 = vmatprep.subr.mxu0 0.0
      %857 = vmatpush1.msra.mxu0 0.0
      %858 = vmatprep.subr.mxu0 0.0
      %859 = vmatpush1.msra.mxu0 0.0
      %860 = vmatprep.subr.mxu0 0.0
      %861 = vmatpush1.msra.mxu0 0.0
      %862 = vmatprep.subr.mxu0 0.0
      %863 = vmatpush1.msra.mxu0 0.0
      %864 = vmatprep.subr.mxu0 0.0
      %865 = vmatpush1.msra.mxu0 0.0
      %866 = vmatprep.subr.mxu0 0.0
      %867 = vmatpush1.msra.mxu0 0.0
      %868 = vmatprep.subr.mxu0 0.0
      %869 = vmatpush1.msra.mxu0 0.0
      %870 = vmatprep.subr.mxu0 0.0
      %871 = vmatpush1.msra.mxu0 0.0
      %872 = vmatprep.subr.mxu0 0.0
      %873 = vmatpush1.msra.mxu0 0.0
      %874 = vmatprep.subr.mxu0 0.0
      %875 = vmatpush1.msra.mxu0 0.0
      %876 = vmatprep.subr.mxu0 0.0
      %877 = vmatpush1.msra.mxu0 0.0
      %878 = vmatprep.subr.mxu0 0.0
      %879 = vmatpush1.msra.mxu0 0.0
      %880 = vmatprep.subr.mxu0 0.0
      %881 = vmatpush1.msra.mxu0 0.0
      %882 = vmatprep.mubr.f32.mxu0 0.0
      %883 = vmatmul.mubr.f32.gmra.mrb[0].mxu0 %v804
      %v884 = vpop.f32.mrb[0].mxu0
      %v885 = vadd.f32 0.0, %v884
      %v886 = vpop.f32.mrb[0].mxu0
      %887 = vmatprep.mubr.f32.mxu0 0.0
      %888 = vmatmul.mubr.f32.gmra.mrb[0].mxu0 %v807
      %v889 = vpop.f32.mrb[0].mxu0
      %v890 = vadd.f32 0.0, %v889
      %v891 = vpop.f32.mrb[0].mxu0
      %892 = vmatprep.mubr.f32.mxu0 0.0
      %893 = vmatmul.mubr.f32.gmra.mrb[0].mxu0 %v810
      %v894 = vpop.f32.mrb[0].mxu0
      %v895 = vadd.f32 0.0, %v894
      %v896 = vpop.f32.mrb[0].mxu0
      %897 = vmatprep.mubr.f32.mxu0 0.0
      %898 = vmatmul.mubr.f32.gmra.mrb[0].mxu0 %v813
      %v899 = vpop.f32.mrb[0].mxu0
      %v900 = vadd.f32 0.0, %v899
      %v901 = vpop.f32.mrb[0].mxu0
      %902 = vmatprep.mubr.f32.mxu0 0.0
      %903 = vmatmul.mubr.f32.gmra.mrb[0].mxu0 %v816
      %v904 = vpop.f32.mrb[0].mxu0
      %v905 = vadd.f32 0.0, %v904
      %v906 = vpop.f32.mrb[0].mxu0
      %907 = vdwg.mxu0
      %v908 = vsub.f32 0.0, %v885
      %v909 = vsub.f32 0.0, %v890
      %v910 = vsub.f32 0.0, %v895
      %v911 = vsub.f32 0.0, %v900
      %v912 = vsub.f32 0.0, %v905
      %v913 = vmul.f32 %v908, 1.442695
      %v914 = vpow.pop %v913
      %v915 = vmul.f32 %v909, 1.442695
      %v916 = vpow.pop %v915
      %v917 = vmul.f32 %v910, 1.442695
      %v918 = vpow.pop %v917
      %v919 = vmul.f32 %v911, 1.442695
      %v920 = vpow.pop %v919
      %v921 = vmul.f32 %v912, 1.442695
      %v922 = vpow.pop %v921
      %923 = vst.msk [vmem:[%s348] sm:$0xff] %vm716, %v914
      %924 = vst.msk [vmem:[%s348 + $0x8] sm:$0xff] %vm716, %v916
      %925 = vst.msk [vmem:[%s348 + $0x10] sm:$0xff] %vm716, %v918
      %926 = vst.msk [vmem:[%s348 + $0x18] sm:$0xff] %vm716, %v920
      %927 = vst.msk [vmem:[%s348 + $0x20] sm:$0xff] %vm716, %v922
      %s928 = smul.u32 5, %s21
      %p929 = scmp.lt.s32.totalorder %s928, 9
      %s930 = scalar_select %p929, %s928, 9
      %s931 = smul.addr %s930, 8
      %s932 = scalar_lea.vmem %s8, %s931
      %s933 = smul.u32 5, %s21
      %p934 = scmp.lt.s32.totalorder %s933, 9
      %s935 = scalar_select %p934, %s933, 9
      %s936 = smul.addr %s935, 8
      %s937 = scalar_lea.vmem %s9, %s936
      // Predicated region
      $region53: #{tpu_custom_call.1} parent=51 // pred_check
        %p938 = pneg %p212
      $region54: #{tpu_custom_call.1} parent=51 // pred_check_branch
        %940 = sbr.rel (%p938) target = $region56
      $region55: #{tpu_custom_call.1} parent=51 // pred_region
        %s941 = smul.u32 5, %s21
      $region56: #{tpu_custom_call.1} parent=51 // pred_fallthru
        _
      // Predicated region
      $region57: #{tpu_custom_call.1} parent=51 // pred_check
        %p942 = pneg %p238
      $region58: #{tpu_custom_call.1} parent=51 // pred_check_branch
        %944 = sbr.rel (%p942) target = $region60
      $region59: #{tpu_custom_call.1} parent=51 // pred_region
        %s945 = smul.u32 5, %s21
      $region60: #{tpu_custom_call.1} parent=51 // pred_fallthru
        _
    $region52: #{tpu_custom_call.1} parent=5 // pred_fallthru
      _
    %p946 = scmp.le.s32.totalorder 2, %s16
    // Predicated region
    $region61: #{tpu_custom_call.1} parent=5 // pred_check
      %p947 = pneg %p946
    $region62: #{tpu_custom_call.1} parent=5 // pred_check_branch
      %949 = sbr.rel (%p947) target = $region64
    $region63: #{tpu_custom_call.1} parent=5 // pred_region
      %s950 = ssub.s32 %s16, 2
      // Predicated region
      $region65: #{tpu_custom_call.1} parent=63 // pred_check
        %p951 = pneg %p218
      $region66: #{tpu_custom_call.1} parent=63 // pred_check_branch
        %953 = sbr.rel (%p951) target = $region68
      $region67: #{tpu_custom_call.1} parent=63 // pred_region
        %s954 = smul.u32 5, %s22
        %p955 = scmp.lt.s32.totalorder %s954, 9
        %s956 = scalar_select %p955, %s954, 9
        %s957 = smul.addr %s956, 8
        %s958 = scalar_lea.vmem %s8, %s957
      $region68: #{tpu_custom_call.1} parent=63 // pred_fallthru
        _
      // Predicated region
      $region69: #{tpu_custom_call.1} parent=63 // pred_check
        %p959 = pneg %p244
      $region70: #{tpu_custom_call.1} parent=63 // pred_check_branch
        %961 = sbr.rel (%p959) target = $region72
      $region71: #{tpu_custom_call.1} parent=63 // pred_region
        %s962 = smul.u32 5, %s22
        %p963 = scmp.lt.s32.totalorder %s962, 9
        %s964 = scalar_select %p963, %s962, 9
        %s965 = smul.addr %s964, 8
        %s966 = scalar_lea.vmem %s9, %s965
      $region72: #{tpu_custom_call.1} parent=63 // pred_fallthru
        _
    $region64: #{tpu_custom_call.1} parent=5 // pred_fallthru
      _
  $region6: #{tpu_custom_call.1} parent=0 // loop_footer
    %s20 = sadd.s32 1, %s16
  $region7: #{tpu_custom_call.1} parent=0 // loop_footer_branch
    %15 = sbr.rel target = $region3
  $region8: #{tpu_custom_call.1} parent=0 // loop_exit
    _

</llo_original>
